<compile_context>
chip_gen: v5e
topology: v5e:2x2
jax: 0.10.0
libtpu: 0.0.40
codegen_flags: <defaults>
</compile_context>

<pallas_src>
import functools

import jax
import jax.numpy as jnp
from jax.experimental import pallas as pl
from jax.experimental.pallas import tpu as pltpu

LOG_SIG_MAX = 2.0
LOG_SIG_MIN = -20.0


def _policy_kernel(x_ref, w1_ref, b1_ref, w2_ref, b2_ref, wh_ref, bh_ref,
                   out_ref, *, action_dim):
    x = x_ref[...]                                              # (TB, S) f32
    # linear1 + relu  (bf16 at MXU inputs, f32 accumulation, f32 elementwise)
    h1 = jnp.dot(x.astype(jnp.bfloat16), w1_ref[...],
                 preferred_element_type=jnp.float32) + b1_ref[...]
    h1 = jnp.maximum(h1, 0.0)                                   # (TB, H) f32
    # linear2 + relu
    h2 = jnp.dot(h1.astype(jnp.bfloat16), w2_ref[...],
                 preferred_element_type=jnp.float32) + b2_ref[...]
    h2 = jnp.maximum(h2, 0.0)                                   # (TB, H) f32
    # fused heads: lanes [0:A] = mean, lanes [A:2A] = log_std
    heads = jnp.dot(h2.astype(jnp.bfloat16), wh_ref[...],
                    preferred_element_type=jnp.float32) + bh_ref[...]
    # clamp only the log_std half (lane >= action_dim); mean stays untouched
    lane = jax.lax.broadcasted_iota(jnp.int32, heads.shape, dimension=1)
    clipped = jnp.clip(heads, LOG_SIG_MIN, LOG_SIG_MAX)
    packed = jnp.where(lane >= action_dim, clipped, heads)
    out_ref[...] = packed.astype(out_ref.dtype)


def _auto_batch_tile(B):
    """One grid step for small batches, 256-row tiles for large ones."""
    rounded = pl.cdiv(B, 8) * 8
    return min(rounded, 256)


def stochastic_policy_forward(state, params, *, tb=None):
    """Pallas-backed forward pass.

    state: (B, state_dim) f32.
    params: (w1, b1, w2, b2, w_heads, b_heads) with weights in (in, out)
            layout, bf16; biases f32 of shape (1, out); w_heads/b_heads are
            [mean | log_std] fused along the output dim.
    Returns (mean, log_std), each (B, action_dim) f32.
    """
    w1, b1, w2, b2, wh, bh = params
    B, S = state.shape
    H = w1.shape[1]
    A2 = wh.shape[1]
    A = A2 // 2

    if tb is None:
        tb = _auto_batch_tile(B)
    # pad batch up to a multiple of the batch tile
    Bp = pl.cdiv(B, tb) * tb
    if Bp != B:
        state = jnp.pad(state, ((0, Bp - B), (0, 0)))
    grid = (Bp // tb,)

    const = lambda shape: pl.BlockSpec(shape, lambda i: (0, 0))

    flops = 2 * Bp * (S * H + H * H + H * A2)
    bytes_accessed = (
        Bp * S * 4 + (w1.size + w2.size + wh.size) * 2
        + (b1.size + b2.size + bh.size) * 4 + Bp * A2 * 4)

    packed = pl.pallas_call(
        functools.partial(_policy_kernel, action_dim=A),
        out_shape=jax.ShapeDtypeStruct((Bp, A2), jnp.float32),
        grid=grid,
        in_specs=[
            pl.BlockSpec((tb, S), lambda i: (i, 0)),   # state: tiled on batch
            const((S, H)), const((1, H)),              # linear1 (resident)
            const((H, H)), const((1, H)),              # linear2 (resident)
            const((H, A2)), const((1, A2)),            # fused heads (resident)
        ],
        out_specs=pl.BlockSpec((tb, A2), lambda i: (i, 0)),
        compiler_params=pltpu.CompilerParams(
            dimension_semantics=("parallel",)),
        cost_estimate=pl.CostEstimate(
            flops=flops, transcendentals=0, bytes_accessed=bytes_accessed),
    )(state, w1, b1, w2, b2, wh, bh)

    packed = packed[:B]
    mean = packed[:, :A]
    log_std = packed[:, A:]
    return mean, log_std


def init_params(key, state_dim, hidden_dim, action_dim):
    """Xavier-uniform init (mimics weights_init_), zero biases.
    Weights stored as (in_dim, out_dim) bf16; head weights/biases fused."""
    def xavier(k, fan_in, fan_out):
        limit = jnp.sqrt(6.0 / (fan_in + fan_out))
        w = jax.random.uniform(k, (fan_in, fan_out), jnp.float32, -limit, limit)
        return w.astype(jnp.bfloat16)

    k1, k2, k3, k4 = jax.random.split(key, 4)
    w1 = xavier(k1, state_dim, hidden_dim)
    b1 = jnp.zeros((1, hidden_dim), jnp.float32)
    w2 = xavier(k2, hidden_dim, hidden_dim)
    b2 = jnp.zeros((1, hidden_dim), jnp.float32)
    wm = xavier(k3, hidden_dim, action_dim)
    ws = xavier(k4, hidden_dim, action_dim)
    w_heads = jnp.concatenate([wm, ws], axis=1)               # (H, 2A) bf16
    b_heads = jnp.zeros((1, 2 * action_dim), jnp.float32)     # (1, 2A)
    return (w1, b1, w2, b2, w_heads, b_heads)


def reference_forward(state, params, action_dim):
    """Pure-JAX reference (same bf16-at-MXU / f32-accumulate recipe)."""
    w1, b1, w2, b2, wh, bh = params
    h1 = jnp.maximum(jnp.dot(state.astype(jnp.bfloat16), w1,
                             preferred_element_type=jnp.float32) + b1, 0.0)
    h2 = jnp.maximum(jnp.dot(h1.astype(jnp.bfloat16), w2,
                             preferred_element_type=jnp.float32) + b2, 0.0)
    heads = jnp.dot(h2.astype(jnp.bfloat16), wh,
                    preferred_element_type=jnp.float32) + bh
    mean = heads[:, :action_dim]
    log_std = jnp.clip(heads[:, action_dim:], LOG_SIG_MIN, LOG_SIG_MAX)
    return mean, log_std


if __name__ == "__main__":
    # Small shapes consistent with the module: batch=32, state_dim=16,
    # hidden_dim=32, action_dim=4.
    B, S, H, A = 32, 16, 32, 4
    key = jax.random.PRNGKey(0)
    k_params, k_state = jax.random.split(key)

    params = init_params(k_params, S, H, A)
    state = jax.random.normal(k_state, (B, S), jnp.float32)

    mean, log_std = stochastic_policy_forward(state, params)
    mean = jax.block_until_ready(mean)
    log_std = jax.block_until_ready(log_std)

    mean_ref, log_std_ref = reference_forward(state, params, A)
    assert mean.shape == (B, A) and log_std.shape == (B, A)
    assert jnp.allclose(mean, mean_ref, atol=2e-3, rtol=2e-3)
    assert jnp.allclose(log_std, log_std_ref, atol=2e-3, rtol=2e-3)
    assert bool(jnp.all(log_std <= LOG_SIG_MAX)) and bool(jnp.all(log_std >= LOG_SIG_MIN))
    # TODO(synk): sample() (rsample / tanh-squash / log_prob) involves host-side
    # stochastic distribution logic; only the deterministic forward() hot path
    # is implemented in Pallas.

    print("KERNEL_OK")
</pallas_src>

<mosaic_0001>
module attributes {stable_mosaic.version = 11 : i64} {
  func.func @_policy_kernel(%arg0: i32, %arg1: memref<32x16xf32, #tpu.memory_space<vmem>>, %arg2: memref<16x32xbf16, #tpu.memory_space<vmem>>, %arg3: memref<1x32xf32, #tpu.memory_space<vmem>>, %arg4: memref<32x32xbf16, #tpu.memory_space<vmem>>, %arg5: memref<1x32xf32, #tpu.memory_space<vmem>>, %arg6: memref<32x8xbf16, #tpu.memory_space<vmem>>, %arg7: memref<1x8xf32, #tpu.memory_space<vmem>>, %arg8: memref<32x8xf32, #tpu.memory_space<vmem>>) attributes {dimension_semantics = [#tpu.dimension_semantics<parallel>], iteration_bounds = array<i64: 1>, scalar_prefetch = 0 : i64, scratch_operands = 0 : i64, tpu.core_type = #tpu.core_type<tc>, window_params = [{transform_indices = @transform_0, window_bounds = array<i64: 32, 16>}, {pipeline_mode = #tpu.pipeline_mode<synchronous>, transform_indices = @transform_1, window_bounds = array<i64: 16, 32>}, {pipeline_mode = #tpu.pipeline_mode<synchronous>, transform_indices = @transform_2, window_bounds = array<i64: 1, 32>}, {pipeline_mode = #tpu.pipeline_mode<synchronous>, transform_indices = @transform_3, window_bounds = array<i64: 32, 32>}, {pipeline_mode = #tpu.pipeline_mode<synchronous>, transform_indices = @transform_4, window_bounds = array<i64: 1, 32>}, {pipeline_mode = #tpu.pipeline_mode<synchronous>, transform_indices = @transform_5, window_bounds = array<i64: 32, 8>}, {pipeline_mode = #tpu.pipeline_mode<synchronous>, transform_indices = @transform_6, window_bounds = array<i64: 1, 8>}, {transform_indices = @transform_7, window_bounds = array<i64: 32, 8>}]} {
    %c0 = arith.constant 0 : index
    %c0_0 = arith.constant 0 : index
    %0 = vector.load %arg1[%c0, %c0_0] : memref<32x16xf32, #tpu.memory_space<vmem>>, vector<32x16xf32>
    %1 = arith.truncf %0 : vector<32x16xf32> to vector<32x16xbf16>
    %c0_1 = arith.constant 0 : index
    %c0_2 = arith.constant 0 : index
    %2 = vector.load %arg2[%c0_1, %c0_2] : memref<16x32xbf16, #tpu.memory_space<vmem>>, vector<16x32xbf16>
    %cst = arith.constant dense<0.000000e+00> : vector<32x32xf32>
    %3 = tpu.matmul %1, %2, %cst {dimension_numbers = #tpu.dot_dimension_numbers<[1], [0], [0], [1], [0, 0, 1, 1], [], []>} : vector<32x16xbf16>, vector<16x32xbf16>, vector<32x32xf32> -> vector<32x32xf32>
    %c0_3 = arith.constant 0 : index
    %c0_4 = arith.constant 0 : index
    %4 = vector.load %arg3[%c0_3, %c0_4] : memref<1x32xf32, #tpu.memory_space<vmem>>, vector<1x32xf32>
    %5 = vector.broadcast %4 : vector<1x32xf32> to vector<32x32xf32>
    %6 = arith.addf %3, %5 : vector<32x32xf32>
    %cst_5 = arith.constant 0.000000e+00 : f32
    %7 = vector.broadcast %cst_5 : f32 to vector<32x32xf32>
    %8 = arith.maximumf %6, %7 : vector<32x32xf32>
    %9 = arith.truncf %8 : vector<32x32xf32> to vector<32x32xbf16>
    %c0_6 = arith.constant 0 : index
    %c0_7 = arith.constant 0 : index
    %10 = vector.load %arg4[%c0_6, %c0_7] : memref<32x32xbf16, #tpu.memory_space<vmem>>, vector<32x32xbf16>
    %cst_8 = arith.constant dense<0.000000e+00> : vector<32x32xf32>
    %11 = tpu.matmul %9, %10, %cst_8 {dimension_numbers = #tpu.dot_dimension_numbers<[1], [0], [0], [1], [0, 0, 1, 1], [], []>} : vector<32x32xbf16>, vector<32x32xbf16>, vector<32x32xf32> -> vector<32x32xf32>
    %c0_9 = arith.constant 0 : index
    %c0_10 = arith.constant 0 : index
    %12 = vector.load %arg5[%c0_9, %c0_10] : memref<1x32xf32, #tpu.memory_space<vmem>>, vector<1x32xf32>
    %13 = vector.broadcast %12 : vector<1x32xf32> to vector<32x32xf32>
    %14 = arith.addf %11, %13 : vector<32x32xf32>
    %cst_11 = arith.constant 0.000000e+00 : f32
    %15 = vector.broadcast %cst_11 : f32 to vector<32x32xf32>
    %16 = arith.maximumf %14, %15 : vector<32x32xf32>
    %17 = arith.truncf %16 : vector<32x32xf32> to vector<32x32xbf16>
    %c0_12 = arith.constant 0 : index
    %c0_13 = arith.constant 0 : index
    %18 = vector.load %arg6[%c0_12, %c0_13] : memref<32x8xbf16, #tpu.memory_space<vmem>>, vector<32x8xbf16>
    %cst_14 = arith.constant dense<0.000000e+00> : vector<32x8xf32>
    %19 = tpu.matmul %17, %18, %cst_14 {dimension_numbers = #tpu.dot_dimension_numbers<[1], [0], [0], [1], [0, 0, 1, 1], [], []>} : vector<32x32xbf16>, vector<32x8xbf16>, vector<32x8xf32> -> vector<32x8xf32>
    %c0_15 = arith.constant 0 : index
    %c0_16 = arith.constant 0 : index
    %20 = vector.load %arg7[%c0_15, %c0_16] : memref<1x8xf32, #tpu.memory_space<vmem>>, vector<1x8xf32>
    %21 = vector.broadcast %20 : vector<1x8xf32> to vector<32x8xf32>
    %22 = arith.addf %19, %21 : vector<32x8xf32>
    %23 = tpu.iota {dimensions = array<i32: 1>} : vector<32x8xi32>
    %cst_17 = arith.constant -2.000000e+01 : f32
    %cst_18 = arith.constant 2.000000e+00 : f32
    %24 = vector.broadcast %cst_17 : f32 to vector<32x8xf32>
    %25 = arith.maximumf %24, %22 : vector<32x8xf32>
    %26 = vector.broadcast %cst_18 : f32 to vector<32x8xf32>
    %27 = arith.minimumf %26, %25 : vector<32x8xf32>
    %c4_i32 = arith.constant 4 : i32
    %28 = vector.broadcast %c4_i32 : i32 to vector<32x8xi32>
    %29 = arith.cmpi sge, %23, %28 : vector<32x8xi32>
    %30 = arith.select %29, %27, %22 : vector<32x8xi1>, vector<32x8xf32>
    %c0_19 = arith.constant 0 : index
    %c0_20 = arith.constant 0 : index
    %31 = vector.load %arg8[%c0_19, %c0_20] : memref<32x8xf32, #tpu.memory_space<vmem>>, vector<32x8xf32>
    tpu.vector_store %arg8[%c0_19, %c0_20], %30 {strides = array<i32>} : memref<32x8xf32, #tpu.memory_space<vmem>>, vector<32x8xf32>,
    return
  }
  func.func @transform_0(%arg0: i32) -> (i32, i32) {
    %c0_i32 = arith.constant 0 : i32
    %c0_i32_0 = arith.constant 0 : i32
    return %arg0, %c0_i32 : i32, i32
  }
  func.func @transform_1(%arg0: i32) -> (i32, i32) {
    %c0_i32 = arith.constant 0 : i32
    %c0_i32_0 = arith.constant 0 : i32
    %c0_i32_1 = arith.constant 0 : i32
    return %c0_i32, %c0_i32_0 : i32, i32
  }
  func.func @transform_2(%arg0: i32) -> (i32, i32) {
    %c0_i32 = arith.constant 0 : i32
    %c0_i32_0 = arith.constant 0 : i32
    %c0_i32_1 = arith.constant 0 : i32
    return %c0_i32, %c0_i32_0 : i32, i32
  }
  func.func @transform_3(%arg0: i32) -> (i32, i32) {
    %c0_i32 = arith.constant 0 : i32
    %c0_i32_0 = arith.constant 0 : i32
    %c0_i32_1 = arith.constant 0 : i32
    return %c0_i32, %c0_i32_0 : i32, i32
  }
  func.func @transform_4(%arg0: i32) -> (i32, i32) {
    %c0_i32 = arith.constant 0 : i32
    %c0_i32_0 = arith.constant 0 : i32
    %c0_i32_1 = arith.constant 0 : i32
    return %c0_i32, %c0_i32_0 : i32, i32
  }
  func.func @transform_5(%arg0: i32) -> (i32, i32) {
    %c0_i32 = arith.constant 0 : i32
    %c0_i32_0 = arith.constant 0 : i32
    %c0_i32_1 = arith.constant 0 : i32
    return %c0_i32, %c0_i32_0 : i32, i32
  }
  func.func @transform_6(%arg0: i32) -> (i32, i32) {
    %c0_i32 = arith.constant 0 : i32
    %c0_i32_0 = arith.constant 0 : i32
    %c0_i32_1 = arith.constant 0 : i32
    return %c0_i32, %c0_i32_0 : i32, i32
  }
  func.func @transform_7(%arg0: i32) -> (i32, i32) {
    %c0_i32 = arith.constant 0 : i32
    %c0_i32_0 = arith.constant 0 : i32
    return %arg0, %c0_i32 : i32, i32
  }
}

</mosaic_0001>

<llo_original>
// kernel: tpu_custom_call.1
$region0: #{tpu_custom_call.1}
  #allocation0 [shape = 'u32[]', space=smem, size = 0x4, offset = 0x4, fixed_abs, tag = 'smem constant byte address 0x4 - core index']
  #allocation1 [shape = 'u32[72,128]{1,0:T(1,128)}', space=vmem, size = 0x9000, scoped, tag = 'internal scratch']
  %s0 = inlined_call_operand.vmem [shape: f32[32,16], index: 0, kind: input, shape index: {}]
  %s1 = inlined_call_operand.vmem [shape: bf16[16,32], index: 1, kind: input, shape index: {}]
  %s2 = inlined_call_operand.vmem [shape: f32[1,32], index: 2, kind: input, shape index: {}]
  %s3 = inlined_call_operand.vmem [shape: bf16[32,32], index: 3, kind: input, shape index: {}]
  %s4 = inlined_call_operand.vmem [shape: f32[1,32], index: 4, kind: input, shape index: {}]
  %s5 = inlined_call_operand.vmem [shape: bf16[32,8], index: 5, kind: input, shape index: {}]
  %s6 = inlined_call_operand.vmem [shape: f32[1,8], index: 6, kind: input, shape index: {}]
  %s7 = inlined_call_operand.vmem [shape: f32[32,8], index: 7, kind: output, shape index: {}]
  %s8 = sld [smem:[#allocation0]]
  $region38: #{tpu_custom_call.1} parent=0
    _
  %s10 = ssub.s32 1, %s8
  %s11 = scalar_select 0, %s10, %s8
  // Predicated region
  $region2: #{tpu_custom_call.1} parent=0 // pred_check
    _
  $region3: #{tpu_custom_call.1} parent=0 // pred_check_branch
    %13 = sbr.rel (0) target = $region5
  $region4: #{tpu_custom_call.1} parent=0 // pred_region
    _
  $region5: #{tpu_custom_call.1} parent=0 // pred_fallthru
    _
  // Predicated region
  $region6: #{tpu_custom_call.1} parent=0 // pred_check
    _
  $region7: #{tpu_custom_call.1} parent=0 // pred_check_branch
    %15 = sbr.rel (0) target = $region9
  $region8: #{tpu_custom_call.1} parent=0 // pred_region
    _
  $region9: #{tpu_custom_call.1} parent=0 // pred_fallthru
    _
  // Predicated region
  $region10: #{tpu_custom_call.1} parent=0 // pred_check
    _
  $region11: #{tpu_custom_call.1} parent=0 // pred_check_branch
    %17 = sbr.rel (0) target = $region13
  $region12: #{tpu_custom_call.1} parent=0 // pred_region
    _
  $region13: #{tpu_custom_call.1} parent=0 // pred_fallthru
    _
  // Predicated region
  $region14: #{tpu_custom_call.1} parent=0 // pred_check
    _
  $region15: #{tpu_custom_call.1} parent=0 // pred_check_branch
    %19 = sbr.rel (0) target = $region17
  $region16: #{tpu_custom_call.1} parent=0 // pred_region
    _
  $region17: #{tpu_custom_call.1} parent=0 // pred_fallthru
    _
  // Predicated region
  $region18: #{tpu_custom_call.1} parent=0 // pred_check
    _
  $region19: #{tpu_custom_call.1} parent=0 // pred_check_branch
    %21 = sbr.rel (0) target = $region21
  $region20: #{tpu_custom_call.1} parent=0 // pred_region
    _
  $region21: #{tpu_custom_call.1} parent=0 // pred_fallthru
    _
  // Predicated region
  $region22: #{tpu_custom_call.1} parent=0 // pred_check
    _
  $region23: #{tpu_custom_call.1} parent=0 // pred_check_branch
    %23 = sbr.rel (0) target = $region25
  $region24: #{tpu_custom_call.1} parent=0 // pred_region
    _
  $region25: #{tpu_custom_call.1} parent=0 // pred_fallthru
    _
  // Predicated region
  $region26: #{tpu_custom_call.1} parent=0 // pred_check
    _
  $region27: #{tpu_custom_call.1} parent=0 // pred_check_branch
    %25 = sbr.rel (0) target = $region29
  $region28: #{tpu_custom_call.1} parent=0 // pred_region
    _
  $region29: #{tpu_custom_call.1} parent=0 // pred_fallthru
    _
  %v27 = vld [vmem:[%s0] sm:$0xff]
  %v28 = vld [vmem:[%s0 + $0x8] sm:$0xff]
  %v29 = vld [vmem:[%s0 + $0x10] sm:$0xff]
  %v30 = vld [vmem:[%s0 + $0x18] sm:$0xff]
  %v31 = vpack.c.bf16 %v28, %v27
  %v32 = vpack.c.bf16 %v30, %v29
  %v33 = vld [vmem:[%s1] sm:$0xf]
  %v34 = vld [vmem:[%s1 + $0x4] sm:$0xf]
  %v35 = vld [vmem:[%s2] sm:$0x1]
  %v37 = vperm.slane %v35, 0
  %v41 = vunpack.c.l.b16 %v33
  %v42 = vunpack.c.l.b16 %v34
  %v43 = vpack.c.b16 %v42, %v41
  %vm45 = vcmask 130048
  %v47 = vsel %vm45, %v31, 0
  %v50 = vsel %vm45, %v32, 0
  %52 = vmatpush.bf16.msra.mxu0 0
  %53 = vmatpush.bf16.msra.mxu0 0
  %54 = vmatpush.bf16.msra.mxu0 0
  %55 = vmatpush.bf16.msra.mxu0 0
  %56 = vmatpush.bf16.msra.mxu0 0
  %57 = vmatpush.bf16.msra.mxu0 0
  %58 = vmatpush.bf16.msra.mxu0 0
  %59 = vmatpush.bf16.msra.mxu0 %v43
  %60 = vmatmul.bf16.gmra.mxu0 %v47
  %v61 = vpop.f32.mrf.mxu0
  %v62 = vadd.f32 %v37, %v61
  %v63 = vpop.f32.mrf.mxu0
  %v64 = vadd.f32 %v37, %v63
  %65 = vmatmul.bf16.gmra.mxu0 %v50
  %v66 = vpop.f32.mrf.mxu0
  %v67 = vadd.f32 %v37, %v66
  %v68 = vpop.f32.mrf.mxu0
  %v69 = vadd.f32 %v37, %v68
  %70 = vdwg.mxu0
  %v71 = vmax.f32 %v62, 0.0
  %v72 = vmax.f32 %v64, 0.0
  %v73 = vmax.f32 %v67, 0.0
  %v74 = vmax.f32 %v69, 0.0
  %v75 = vpack.c.bf16 %v72, %v71
  %v76 = vpack.c.bf16 %v74, %v73
  %v77 = vld [vmem:[%s3] sm:$0xf]
  %v78 = vld [vmem:[%s3 + $0x4] sm:$0xf]
  %v79 = vld [vmem:[%s3 + $0x8] sm:$0xf]
  %v80 = vld [vmem:[%s3 + $0xc] sm:$0xf]
  %v81 = vld [vmem:[%s4] sm:$0x1]
  %v83 = vperm.slane %v81, 0
  %v89 = vunpack.c.l.b16 %v77
  %v90 = vunpack.c.l.b16 %v78
  %v91 = vunpack.c.l.b16 %v79
  %v92 = vunpack.c.l.b16 %v80
  %v93 = vpack.c.b16 %v90, %v89
  %v94 = vpack.c.b16 %v92, %v91
  %vm97 = vcmask 261120
  %v99 = vsel %vm97, %v75, 0
  %v102 = vsel %vm97, %v76, 0
  %104 = vmatpush.bf16.msra.mxu0 0
  %105 = vmatpush.bf16.msra.mxu0 0
  %106 = vmatpush.bf16.msra.mxu0 0
  %107 = vmatpush.bf16.msra.mxu0 0
  %108 = vmatpush.bf16.msra.mxu0 0
  %109 = vmatpush.bf16.msra.mxu0 0
  %110 = vmatpush.bf16.msra.mxu0 %v94
  %111 = vmatpush.bf16.msra.mxu0 %v93
  %112 = vmatmul.bf16.gmra.mxu0 %v99
  %v113 = vpop.f32.mrf.mxu0
  %v114 = vadd.f32 %v83, %v113
  %v115 = vpop.f32.mrf.mxu0
  %v116 = vadd.f32 %v83, %v115
  %117 = vmatmul.bf16.gmra.mxu0 %v102
  %v118 = vpop.f32.mrf.mxu0
  %v119 = vadd.f32 %v83, %v118
  %v120 = vpop.f32.mrf.mxu0
  %v121 = vadd.f32 %v83, %v120
  %122 = vdwg.mxu0
  %v123 = vmax.f32 %v114, 0.0
  %v124 = vmax.f32 %v116, 0.0
  %v125 = vmax.f32 %v119, 0.0
  %v126 = vmax.f32 %v121, 0.0
  %v127 = vpack.c.bf16 %v124, %v123
  %v128 = vpack.c.bf16 %v126, %v125
  %v129 = vld [vmem:[%s5] sm:$0xf]
  %v130 = vld [vmem:[%s5 + $0x4] sm:$0xf]
  %v131 = vld [vmem:[%s5 + $0x8] sm:$0xf]
  %v132 = vld [vmem:[%s5 + $0xc] sm:$0xf]
  %v133 = vld [vmem:[%s6] sm:$0x1]
  %v135 = vperm.slane %v133, 0
  %v141 = vunpack.c.l.b16 %v129
  %v142 = vunpack.c.l.b16 %v130
  %v143 = vunpack.c.l.b16 %v131
  %v144 = vunpack.c.l.b16 %v132
  %v145 = vpack.c.b16 %v142, %v141
  %v146 = vpack.c.b16 %v144, %v143
  %v150 = vsel %vm97, %v127, 0
  %v153 = vsel %vm97, %v128, 0
  %155 = vmatpush.bf16.msra.mxu0 0
  %156 = vmatpush.bf16.msra.mxu0 0
  %157 = vmatpush.bf16.msra.mxu0 0
  %158 = vmatpush.bf16.msra.mxu0 0
  %159 = vmatpush.bf16.msra.mxu0 0
  %160 = vmatpush.bf16.msra.mxu0 0
  %161 = vmatpush.bf16.msra.mxu0 %v146
  %162 = vmatpush.bf16.msra.mxu0 %v145
  %163 = vmatmul.bf16.gmra.mxu0 %v150
  %v164 = vpop.f32.mrf.mxu0
  %v165 = vadd.f32 %v135, %v164
  %v166 = vpop.f32.mrf.mxu0
  %v167 = vadd.f32 %v135, %v166
  %168 = vmatmul.bf16.gmra.mxu0 %v153
  %v169 = vpop.f32.mrf.mxu0
  %v170 = vadd.f32 %v135, %v169
  %v171 = vpop.f32.mrf.mxu0
  %v172 = vadd.f32 %v135, %v171
  %173 = vdwg.mxu0
  %v174 = vlaneseq
  %v175 = vand.u32 %v174, 127
  %v176 = vmax.f32 %v165, -20.0
  %v177 = vmax.f32 %v167, -20.0
  %v178 = vmax.f32 %v170, -20.0
  %v179 = vmax.f32 %v172, -20.0
  %v180 = vmin.f32 %v176, 2.0
  %v181 = vmin.f32 %v177, 2.0
  %v182 = vmin.f32 %v178, 2.0
  %v183 = vmin.f32 %v179, 2.0
  %vm184 = vcmp.ge.s32.totalorder %v175, 4
  %v185 = vsel %vm184, %v180, %v165
  %v186 = vsel %vm184, %v181, %v167
  %v187 = vsel %vm184, %v182, %v170
  %v188 = vsel %vm184, %v183, %v172
  %vm189 = vcmask 64512
  %190 = vst.msk [vmem:[%s7] sm:$0xff] %vm189, %v185
  %191 = vst.msk [vmem:[%s7 + $0x8] sm:$0xff] %vm189, %v186
  %192 = vst.msk [vmem:[%s7 + $0x10] sm:$0xff] %vm189, %v187
  %193 = vst.msk [vmem:[%s7 + $0x18] sm:$0xff] %vm189, %v188
  // Predicated region
  $region30: #{tpu_custom_call.1} parent=0 // pred_check
    _
  $region31: #{tpu_custom_call.1} parent=0 // pred_check_branch
    %195 = sbr.rel (0) target = $region33
  $region32: #{tpu_custom_call.1} parent=0 // pred_region
    _
  $region33: #{tpu_custom_call.1} parent=0 // pred_fallthru
    _
  // Predicated region
  $region34: #{tpu_custom_call.1} parent=0 // pred_check
    _
  $region35: #{tpu_custom_call.1} parent=0 // pred_check_branch
    %197 = sbr.rel (0) target = $region37
  $region36: #{tpu_custom_call.1} parent=0 // pred_region
    _
  $region37: #{tpu_custom_call.1} parent=0 // pred_fallthru
    _

</llo_original>
